<compile_context>
chip_gen: v7x
topology: tpu7x:2x2x1
jax: 0.10.0
libtpu: 0.0.40
codegen_flags: <defaults>
</compile_context>

<pallas_src>
from functools import partial

import jax
import jax.numpy as jnp
from jax import lax
from jax.experimental import pallas as pl
from jax.experimental.pallas import tpu as pltpu


# ---------------------------------------------------------------------------
# Fused kernel: cv1 (1x1) -> cv2 (3x3, pad=1) -> optional residual add.
# x_ref holds a row tile WITH a 1-row halo on each side: (1, th+2, W, C1).
# ---------------------------------------------------------------------------
def _bottleneck_kernel(x_ref, w1_ref, b1_ref, w3_ref, b2_ref, o_ref,
                       *, th, W, add, nt):
    i = pl.program_id(1)                                     # row-tile index
    C1 = x_ref.shape[-1]
    c_ = w1_ref.shape[-1]
    C2 = o_ref.shape[-1]

    xf = x_ref[0]                                            # (th+2, W, C1) f32

    # ---- cv1: 1x1 conv == one channel matmul (bf16 MXU, f32 accumulate) ----
    y1 = jnp.dot(xf.astype(jnp.bfloat16).reshape((th + 2) * W, C1),
                 w1_ref[...],                                # (C1, c_) bf16, BN scale folded
                 preferred_element_type=jnp.float32)         # ((th+2)*W, c_)
    y1 = y1 + b1_ref[...]                                    # folded BN bias
    y1 = jnp.where(y1 > 0, y1, 0.1 * y1)                     # LeakyReLU(0.1)
    y1 = y1.reshape(th + 2, W, c_)

    # Halo rows at the true image border must act as cv2's zero padding
    # (cv1 of a zero-padded x row is NOT zero because of the BN bias).
    r = lax.broadcasted_iota(jnp.int32, (th + 2, 1, 1), 0)
    border = jnp.logical_or(jnp.logical_and(i == 0, r == 0),
                            jnp.logical_and(i == nt - 1, r == th + 1))
    y1 = jnp.where(border, 0.0, y1).astype(jnp.bfloat16)     # (th+2, W, c_)

    # ---- cv2: 3x3 conv as ONE K = 9*c_ matmul (im2col built in VMEM) ----
    zc = jnp.zeros((th + 2, 1, c_), jnp.bfloat16)
    left = jnp.concatenate([zc, y1[:, :W - 1, :]], axis=1)   # kx = 0 tap
    right = jnp.concatenate([y1[:, 1:, :], zc], axis=1)      # kx = 2 tap
    kxs = jnp.concatenate([left, y1, right], axis=-1)        # (th+2, W, 3*c_)
    patches = jnp.concatenate(                               # ky = 0,1,2 taps
        [kxs[0:th], kxs[1:th + 1], kxs[2:th + 2]], axis=-1)  # (th, W, 9*c_)

    y2 = jnp.dot(patches.reshape(th * W, 9 * c_),
                 w3_ref[...],                                # (9*c_, C2) bf16, BN scale folded
                 preferred_element_type=jnp.float32)         # (th*W, C2)
    y2 = y2 + b2_ref[...]                                    # folded BN bias
    y2 = jnp.where(y2 > 0, y2, 0.1 * y2)                     # LeakyReLU(0.1)
    y2 = y2.reshape(th, W, C2)

    if add:
        y2 = y2 + xf[1:th + 1]                               # residual (f32)
    o_ref[0] = y2.astype(o_ref.dtype)


def _pick_row_tile(H, W, cmax):
    """Largest divisor of H giving ~<=1 MiB f32 input row-tile; >=2 tiles if possible."""
    target = max(1, (1 << 20) // max(1, W * cmax * 4))
    th = 1
    for t in range(1, H + 1):
        if H % t == 0 and t <= target:
            th = t
    if th == H and H > 1:            # prefer >=2 tiles (megacore / pipelining)
        for t in range(H - 1, 0, -1):
            if H % t == 0:
                th = t
                break
    return th


# ---------------------------------------------------------------------------
# Wrapper: BN folding, halo'd row-tile gather, pallas_call plumbing.
# ---------------------------------------------------------------------------
def bottleneck_pallas(x_nchw, w1_oihw, g1, b1, m1, v1,
                      w3_oihw, g2, b2, m2, v2,
                      shortcut=True, eps=1e-5, row_tile=None):
    N, C1, H, W = x_nchw.shape
    c_ = w1_oihw.shape[0]
    C2 = w3_oihw.shape[0]
    add = bool(shortcut and C1 == C2)

    th = _pick_row_tile(H, W, max(C1, C2)) if row_tile is None else row_tile
    assert H % th == 0
    nt = H // th

    # NCHW -> NHWC (glue)
    x = jnp.transpose(x_nchw, (0, 2, 3, 1)).astype(jnp.float32)     # (N,H,W,C1)

    # Fold eval-mode BN: scale into conv weights (bf16), bias kept in f32.
    inv1 = g1 / jnp.sqrt(v1 + eps)
    w1 = (jnp.transpose(w1_oihw[:, :, 0, 0], (1, 0)) * inv1[None, :]
          ).astype(jnp.bfloat16)                                    # (C1, c_)
    bb1 = (b1 - m1 * inv1).reshape(1, c_).astype(jnp.float32)

    inv2 = g2 / jnp.sqrt(v2 + eps)
    w3 = (jnp.transpose(w3_oihw, (2, 3, 1, 0))                      # (ky,kx,cin,cout)
          * inv2[None, None, None, :]).reshape(9 * c_, C2).astype(jnp.bfloat16)
    bb2 = (b2 - m2 * inv2).reshape(1, C2).astype(jnp.float32)

    # Row tiles with a 1-row halo (so the fused kernel never needs a
    # neighbor tile); only x is touched once extra, the cv1 intermediate
    # never goes to HBM.
    xp = jnp.pad(x, ((0, 0), (1, 1), (0, 0), (0, 0)))               # (N,H+2,W,C1)
    x_tiles = jnp.concatenate(
        [xp[:, t * th:t * th + th + 2][:, None] for t in range(nt)], axis=1)
    x_tiles = x_tiles.reshape(N * nt, th + 2, W, C1)

    out = pl.pallas_call(
        partial(_bottleneck_kernel, th=th, W=W, add=add, nt=nt),
        out_shape=jax.ShapeDtypeStruct((N * nt, th, W, C2), jnp.float32),
        grid=(N, nt),
        in_specs=[
            pl.BlockSpec((1, th + 2, W, C1), lambda n, i: (n * nt + i, 0, 0, 0)),
            pl.BlockSpec((C1, c_), lambda n, i: (0, 0)),
            pl.BlockSpec((1, c_), lambda n, i: (0, 0)),
            pl.BlockSpec((9 * c_, C2), lambda n, i: (0, 0)),
            pl.BlockSpec((1, C2), lambda n, i: (0, 0)),
        ],
        out_specs=pl.BlockSpec((1, th, W, C2), lambda n, i: (n * nt + i, 0, 0, 0)),
        compiler_params=pltpu.CompilerParams(
            dimension_semantics=("parallel", "parallel")),
    )(x_tiles, w1, bb1, w3, bb2)

    # (N*nt, th, W, C2) -> (N, H, W, C2) -> NCHW (glue)
    out = out.reshape(N, H, W, C2)
    return jnp.transpose(out, (0, 3, 1, 2))


# ---------------------------------------------------------------------------
# Pure-JAX reference (f32) for correctness verification
# ---------------------------------------------------------------------------
def bottleneck_ref(x, w1, g1, b1, m1, v1, w3, g2, b2, m2, v2,
                   shortcut=True, eps=1e-5):
    def bn(y, g, b, m, v):
        g, b, m, v = (t[None, :, None, None] for t in (g, b, m, v))
        return (y - m) / jnp.sqrt(v + eps) * g + b

    def leaky(y):
        return jnp.where(y > 0, y, 0.1 * y)

    dn = ('NCHW', 'OIHW', 'NCHW')
    y = jax.lax.conv_general_dilated(x, w1, (1, 1), 'VALID',
                                     dimension_numbers=dn)
    y = leaky(bn(y, g1, b1, m1, v1))
    y = jax.lax.conv_general_dilated(y, w3, (1, 1), ((1, 1), (1, 1)),
                                     dimension_numbers=dn)
    y = leaky(bn(y, g2, b2, m2, v2))
    if shortcut and x.shape[1] == y.shape[1]:
        y = x + y
    return y


if __name__ == "__main__":
    key = jax.random.PRNGKey(0)
    N, C1, C2, H, W = 2, 8, 8, 16, 16
    e = 0.5
    c_ = int(C2 * e)

    ks = jax.random.split(key, 12)
    x = jax.random.normal(ks[0], (N, C1, H, W), jnp.float32)

    # cv1: Conv2d(c1, c_, 1, bias=False) + BN(c_)
    w1 = 0.2 * jax.random.normal(ks[1], (c_, C1, 1, 1), jnp.float32)
    g1 = 1.0 + 0.1 * jax.random.normal(ks[2], (c_,), jnp.float32)
    b1 = 0.1 * jax.random.normal(ks[3], (c_,), jnp.float32)
    m1 = 0.1 * jax.random.normal(ks[4], (c_,), jnp.float32)
    v1 = jax.random.uniform(ks[5], (c_,), jnp.float32, 0.5, 1.5)

    # cv2: Conv2d(c_, c2, 3, pad=1, bias=False) + BN(c2)
    w3 = 0.2 * jax.random.normal(ks[6], (C2, c_, 3, 3), jnp.float32)
    g2 = 1.0 + 0.1 * jax.random.normal(ks[7], (C2,), jnp.float32)
    b2 = 0.1 * jax.random.normal(ks[8], (C2,), jnp.float32)
    m2 = 0.1 * jax.random.normal(ks[9], (C2,), jnp.float32)
    v2 = jax.random.uniform(ks[10], (C2,), jnp.float32, 0.5, 1.5)

    out = bottleneck_pallas(x, w1, g1, b1, m1, v1, w3, g2, b2, m2, v2,
                            shortcut=True)
    out = jax.block_until_ready(out)

    ref = bottleneck_ref(x, w1, g1, b1, m1, v1, w3, g2, b2, m2, v2,
                         shortcut=True)
    ref = jax.block_until_ready(ref)

    err = float(jnp.max(jnp.abs(out - ref)))
    assert out.shape == (N, C2, H, W)
    # bf16 MXU operands vs f32 reference -> relaxed tolerance (logic errors
    # would show up as O(1) differences, well above this bound).
    assert err < 1e-1, f"max abs err too large: {err}"
    print("KERNEL_OK")
</pallas_src>

<mosaic_0001>
module attributes {stable_mosaic.version = 11 : i64} {
  func.func @_bottleneck_kernel(%arg0: i32, %arg1: i32, %arg2: memref<1x10x16x8xf32, #tpu.memory_space<vmem>>, %arg3: memref<8x4xbf16, #tpu.memory_space<vmem>>, %arg4: memref<1x4xf32, #tpu.memory_space<vmem>>, %arg5: memref<36x8xbf16, #tpu.memory_space<vmem>>, %arg6: memref<1x8xf32, #tpu.memory_space<vmem>>, %arg7: memref<1x8x16x8xf32, #tpu.memory_space<vmem>>) attributes {dimension_semantics = [#tpu.dimension_semantics<parallel>, #tpu.dimension_semantics<parallel>], iteration_bounds = array<i64: 2, 2>, scalar_prefetch = 0 : i64, scratch_operands = 0 : i64, tpu.core_type = #tpu.core_type<tc>, window_params = [{transform_indices = @transform_0, window_bounds = array<i64: 1, 10, 16, 8>}, {pipeline_mode = #tpu.pipeline_mode<synchronous>, transform_indices = @transform_1, window_bounds = array<i64: 8, 4>}, {pipeline_mode = #tpu.pipeline_mode<synchronous>, transform_indices = @transform_2, window_bounds = array<i64: 1, 4>}, {pipeline_mode = #tpu.pipeline_mode<synchronous>, transform_indices = @transform_3, window_bounds = array<i64: 36, 8>}, {pipeline_mode = #tpu.pipeline_mode<synchronous>, transform_indices = @transform_4, window_bounds = array<i64: 1, 8>}, {transform_indices = @transform_5, window_bounds = array<i64: 1, 8, 16, 8>}]} {
    %c0 = arith.constant 0 : index
    %c0_0 = arith.constant 0 : index
    %c0_1 = arith.constant 0 : index
    %c0_2 = arith.constant 0 : index
    %0 = vector.load %arg2[%c0, %c0_0, %c0_1, %c0_2] : memref<1x10x16x8xf32, #tpu.memory_space<vmem>>, vector<1x10x16x8xf32>
    %1 = vector.shape_cast %0 : vector<1x10x16x8xf32> to vector<10x16x8xf32>
    %2 = arith.truncf %1 : vector<10x16x8xf32> to vector<10x16x8xbf16>
    %3 = vector.shape_cast %2 : vector<10x16x8xbf16> to vector<160x8xbf16>
    %c0_3 = arith.constant 0 : index
    %c0_4 = arith.constant 0 : index
    %4 = vector.load %arg3[%c0_3, %c0_4] : memref<8x4xbf16, #tpu.memory_space<vmem>>, vector<8x4xbf16>
    %cst = arith.constant dense<0.000000e+00> : vector<160x4xf32>
    %5 = tpu.matmul %3, %4, %cst {dimension_numbers = #tpu.dot_dimension_numbers<[1], [0], [0], [1], [0, 0, 1, 1], [], []>} : vector<160x8xbf16>, vector<8x4xbf16>, vector<160x4xf32> -> vector<160x4xf32>
    %c0_5 = arith.constant 0 : index
    %c0_6 = arith.constant 0 : index
    %6 = vector.load %arg4[%c0_5, %c0_6] : memref<1x4xf32, #tpu.memory_space<vmem>>, vector<1x4xf32>
    %7 = vector.broadcast %6 : vector<1x4xf32> to vector<160x4xf32>
    %8 = arith.addf %5, %7 : vector<160x4xf32>
    %cst_7 = arith.constant 0.000000e+00 : f32
    %9 = vector.broadcast %cst_7 : f32 to vector<160x4xf32>
    %10 = arith.cmpf ogt, %8, %9 : vector<160x4xf32>
    %cst_8 = arith.constant 1.000000e-01 : f32
    %11 = vector.broadcast %cst_8 : f32 to vector<160x4xf32>
    %12 = arith.mulf %11, %8 : vector<160x4xf32>
    %13 = arith.select %10, %8, %12 : vector<160x4xi1>, vector<160x4xf32>
    %14 = vector.shape_cast %13 : vector<160x4xf32> to vector<10x16x4xf32>
    %15 = tpu.iota {dimensions = array<i32: 0>} : vector<10x1x1xi32>
    %c0_i32 = arith.constant 0 : i32
    %16 = arith.cmpi eq, %arg1, %c0_i32 : i32
    %c0_i32_9 = arith.constant 0 : i32
    %17 = vector.broadcast %c0_i32_9 : i32 to vector<10x1x1xi32>
    %18 = arith.cmpi eq, %15, %17 : vector<10x1x1xi32>
    %19 = vector.broadcast %16 : i1 to vector<10x1x1xi1>
    %20 = arith.andi %19, %18 : vector<10x1x1xi1>
    %c1_i32 = arith.constant 1 : i32
    %21 = arith.cmpi eq, %arg1, %c1_i32 : i32
    %c9_i32 = arith.constant 9 : i32
    %22 = vector.broadcast %c9_i32 : i32 to vector<10x1x1xi32>
    %23 = arith.cmpi eq, %15, %22 : vector<10x1x1xi32>
    %24 = vector.broadcast %21 : i1 to vector<10x1x1xi1>
    %25 = arith.andi %24, %23 : vector<10x1x1xi1>
    %26 = arith.ori %20, %25 : vector<10x1x1xi1>
    %cst_10 = arith.constant 0.000000e+00 : f32
    %27 = vector.shape_cast %26 : vector<10x1x1xi1> to vector<10x1x1xi1>
    %28 = vector.broadcast %27 : vector<10x1x1xi1> to vector<10x16x4xi1>
    %29 = vector.broadcast %cst_10 : f32 to vector<10x16x4xf32>
    %30 = arith.select %28, %29, %14 : vector<10x16x4xi1>, vector<10x16x4xf32>
    %31 = arith.truncf %30 : vector<10x16x4xf32> to vector<10x16x4xbf16>
    %cst_11 = arith.constant 0.000000e+00 : bf16
    %32 = vector.broadcast %cst_11 : bf16 to vector<10x1x4xbf16>
    %33 = vector.extract_strided_slice %31 {offsets = [0, 0, 0], sizes = [10, 15, 4], strides = [1, 1, 1]} : vector<10x16x4xbf16> to vector<10x15x4xbf16>
    %34 = tpu.concatenate %32, %33 in 1 : vector<10x1x4xbf16>, vector<10x15x4xbf16> -> vector<10x16x4xbf16>
    %35 = vector.extract_strided_slice %31 {offsets = [0, 1, 0], sizes = [10, 15, 4], strides = [1, 1, 1]} : vector<10x16x4xbf16> to vector<10x15x4xbf16>
    %36 = tpu.concatenate %35, %32 in 1 : vector<10x15x4xbf16>, vector<10x1x4xbf16> -> vector<10x16x4xbf16>
    %37 = tpu.concatenate %34, %31, %36 in 2 : vector<10x16x4xbf16>, vector<10x16x4xbf16>, vector<10x16x4xbf16> -> vector<10x16x12xbf16>
    %38 = vector.extract_strided_slice %37 {offsets = [0, 0, 0], sizes = [8, 16, 12], strides = [1, 1, 1]} : vector<10x16x12xbf16> to vector<8x16x12xbf16>
    %39 = vector.extract_strided_slice %37 {offsets = [1, 0, 0], sizes = [8, 16, 12], strides = [1, 1, 1]} : vector<10x16x12xbf16> to vector<8x16x12xbf16>
    %40 = vector.extract_strided_slice %37 {offsets = [2, 0, 0], sizes = [8, 16, 12], strides = [1, 1, 1]} : vector<10x16x12xbf16> to vector<8x16x12xbf16>
    %41 = tpu.concatenate %38, %39, %40 in 2 : vector<8x16x12xbf16>, vector<8x16x12xbf16>, vector<8x16x12xbf16> -> vector<8x16x36xbf16>
    %42 = vector.shape_cast %41 : vector<8x16x36xbf16> to vector<128x36xbf16>
    %c0_12 = arith.constant 0 : index
    %c0_13 = arith.constant 0 : index
    %43 = vector.load %arg5[%c0_12, %c0_13] : memref<36x8xbf16, #tpu.memory_space<vmem>>, vector<36x8xbf16>
    %cst_14 = arith.constant dense<0.000000e+00> : vector<128x8xf32>
    %44 = tpu.matmul %42, %43, %cst_14 {dimension_numbers = #tpu.dot_dimension_numbers<[1], [0], [0], [1], [0, 0, 1, 1], [], []>} : vector<128x36xbf16>, vector<36x8xbf16>, vector<128x8xf32> -> vector<128x8xf32>
    %c0_15 = arith.constant 0 : index
    %c0_16 = arith.constant 0 : index
    %45 = vector.load %arg6[%c0_15, %c0_16] : memref<1x8xf32, #tpu.memory_space<vmem>>, vector<1x8xf32>
    %46 = vector.broadcast %45 : vector<1x8xf32> to vector<128x8xf32>
    %47 = arith.addf %44, %46 : vector<128x8xf32>
    %cst_17 = arith.constant 0.000000e+00 : f32
    %48 = vector.broadcast %cst_17 : f32 to vector<128x8xf32>
    %49 = arith.cmpf ogt, %47, %48 : vector<128x8xf32>
    %cst_18 = arith.constant 1.000000e-01 : f32
    %50 = vector.broadcast %cst_18 : f32 to vector<128x8xf32>
    %51 = arith.mulf %50, %47 : vector<128x8xf32>
    %52 = arith.select %49, %47, %51 : vector<128x8xi1>, vector<128x8xf32>
    %53 = vector.shape_cast %52 : vector<128x8xf32> to vector<8x16x8xf32>
    %54 = vector.extract_strided_slice %1 {offsets = [1, 0, 0], sizes = [8, 16, 8], strides = [1, 1, 1]} : vector<10x16x8xf32> to vector<8x16x8xf32>
    %55 = arith.addf %53, %54 : vector<8x16x8xf32>
    %c0_19 = arith.constant 0 : index
    %c0_20 = arith.constant 0 : index
    %c0_21 = arith.constant 0 : index
    %c0_22 = arith.constant 0 : index
    %56 = vector.load %arg7[%c0_19, %c0_20, %c0_21, %c0_22] : memref<1x8x16x8xf32, #tpu.memory_space<vmem>>, vector<1x8x16x8xf32>
    %57 = vector.shape_cast %56 : vector<1x8x16x8xf32> to vector<8x16x8xf32>
    %58 = vector.shape_cast %55 : vector<8x16x8xf32> to vector<1x8x16x8xf32>
    tpu.vector_store %arg7[%c0_19, %c0_20, %c0_21, %c0_22], %58 {strides = array<i32>} : memref<1x8x16x8xf32, #tpu.memory_space<vmem>>, vector<1x8x16x8xf32>,
    return
  }
  func.func @transform_0(%arg0: i32, %arg1: i32) -> (i32, i32, i32, i32) {
    %c2_i32 = arith.constant 2 : i32
    %0 = arith.muli %arg0, %c2_i32 : i32
    %1 = arith.addi %0, %arg1 : i32
    %c0_i32 = arith.constant 0 : i32
    %c0_i32_0 = arith.constant 0 : i32
    %c0_i32_1 = arith.constant 0 : i32
    %c0_i32_2 = arith.constant 0 : i32
    return %1, %c0_i32, %c0_i32_0, %c0_i32_1 : i32, i32, i32, i32
  }
  func.func @transform_1(%arg0: i32, %arg1: i32) -> (i32, i32) {
    %c0_i32 = arith.constant 0 : i32
    %c0_i32_0 = arith.constant 0 : i32
    %c0_i32_1 = arith.constant 0 : i32
    return %c0_i32, %c0_i32_0 : i32, i32
  }
  func.func @transform_2(%arg0: i32, %arg1: i32) -> (i32, i32) {
    %c0_i32 = arith.constant 0 : i32
    %c0_i32_0 = arith.constant 0 : i32
    %c0_i32_1 = arith.constant 0 : i32
    return %c0_i32, %c0_i32_0 : i32, i32
  }
  func.func @transform_3(%arg0: i32, %arg1: i32) -> (i32, i32) {
    %c0_i32 = arith.constant 0 : i32
    %c0_i32_0 = arith.constant 0 : i32
    %c0_i32_1 = arith.constant 0 : i32
    return %c0_i32, %c0_i32_0 : i32, i32
  }
  func.func @transform_4(%arg0: i32, %arg1: i32) -> (i32, i32) {
    %c0_i32 = arith.constant 0 : i32
    %c0_i32_0 = arith.constant 0 : i32
    %c0_i32_1 = arith.constant 0 : i32
    return %c0_i32, %c0_i32_0 : i32, i32
  }
  func.func @transform_5(%arg0: i32, %arg1: i32) -> (i32, i32, i32, i32) {
    %c2_i32 = arith.constant 2 : i32
    %0 = arith.muli %arg0, %c2_i32 : i32
    %1 = arith.addi %0, %arg1 : i32
    %c0_i32 = arith.constant 0 : i32
    %c0_i32_0 = arith.constant 0 : i32
    %c0_i32_1 = arith.constant 0 : i32
    %c0_i32_2 = arith.constant 0 : i32
    return %1, %c0_i32, %c0_i32_0, %c0_i32_1 : i32, i32, i32, i32
  }
}

</mosaic_0001>

<llo_original>
// kernel: tpu_custom_call.1
$region0: #{tpu_custom_call.1}
  #allocation0 [shape = 'u32[]', space=smem, size = 0x4, offset = 0x4, fixed_abs, tag = 'smem constant byte address 0x4 - core index']
  #allocation1 [shape = 'u32[144,128]{1,0:T(1,128)}', space=vmem, size = 0x12000, scoped, tag = 'internal scratch']
  %s0 = inlined_call_operand.vmem [shape: f32[4,10,16,8], index: 0, kind: input, shape index: {}]
  %s1 = inlined_call_operand.vmem [shape: bf16[8,4], index: 1, kind: input, shape index: {}]
  %s2 = inlined_call_operand.vmem [shape: f32[1,4], index: 2, kind: input, shape index: {}]
  %s3 = inlined_call_operand.vmem [shape: bf16[36,8], index: 3, kind: input, shape index: {}]
  %s4 = inlined_call_operand.vmem [shape: f32[1,8], index: 4, kind: input, shape index: {}]
  %s5 = inlined_call_operand.vmem [shape: f32[4,8,16,8], index: 5, kind: output, shape index: {}]
  %s6 = sld [smem:[#allocation0]]
  $region53: #{tpu_custom_call.1} parent=0
    _
  %s8 = ssub.s32 1, %s6
  %s9 = scalar_select 0, %s8, %s6
  loop: start=0, step=1, limit=6
  $region2: #{tpu_custom_call.1} parent=0 // loop_pre_header
    _
  $region3: #{tpu_custom_call.1} parent=0 // loop_header
    %s11 = sphi 0, %s15
    %p12 = scmp.ge.s32.totalorder %s11, 6
    %s18 = sphi 0, %s30
    %s19 = sphi 0, %s26
    %s20 = sphi 0, %s18
    %s21 = sphi 0, %s19
    %s22 = sphi 0, %s20
    %s23 = sphi 0, %s21
    %s37 = sphi 0, %s39
    %s40 = sphi 0, %s37
    %s41 = sphi 0, %s40
    %s57 = sphi 0, %s41
    %s61 = sphi 0, %s61
    %s63 = sphi 0, %s61
    %s64 = sphi 0, %s63
    %s78 = sphi 0, %s64
    %s82 = sphi 0, %s82
    %s84 = sphi 0, %s82
    %s85 = sphi 0, %s84
    %s99 = sphi 0, %s85
    %s103 = sphi 0, %s103
    %s105 = sphi 0, %s103
    %s106 = sphi 0, %s105
    %s120 = sphi 0, %s106
    %s124 = sphi 0, %s124
    %s126 = sphi 0, %s124
    %s127 = sphi 0, %s126
    %s141 = sphi 0, %s127
    %s151 = sphi 0, %s153
    %s154 = sphi 0, %s151
    %s155 = sphi 0, %s154
    %s171 = sphi 0, %s155
  $region4: #{tpu_custom_call.1} parent=0 // loop_header_branch
    %14 = sbr.rel (%p12) target = $region8
  $region5: #{tpu_custom_call.1} parent=0 // loop_body
    %s16 = ssub.s32 %s11, 1
    %s17 = ssub.s32 %s11, 2
    %s24 = sadd.s32 1, %s19
    %p25 = scmp.ge.s32.totalorder %s24, 2
    %s26 = scalar_select %p25, 0, %s24
    %s27 = sadd.s32 1, %s18
    %s28 = scalar_select %p25, %s27, %s18
    %p29 = scmp.ge.s32.totalorder %s28, 2
    %s30 = scalar_select %p29, 0, %s28
    %s31 = smul.u32 %s18, 2
    %s32 = sadd.s32 %s31, %s19
    %s33 = smul.u32 %s30, 2
    %s34 = sadd.s32 %s33, %s26
    %s35 = ssub.s32 %s32, %s34
    %p36 = scmp.eq.s32.totalorder %s35, 0
    %s38 = sadd.s32 %s37, 1
    %s39 = scalar_select %p36, %s37, %s38
    %p42 = pneg %p36
    %p43 = scmp.eq.s32.totalorder %s11, 3
    %p44 = por %p42, %p43
    %p45 = scmp.ne.s32.totalorder %s37, %s40
    %p46 = scmp.eq.s32.totalorder %s11, 0
    %p47 = por %p45, %p46
    %p48 = scmp.ne.s32.totalorder %s37, %s40
    %p49 = scmp.eq.s32.totalorder %s16, 3
    %p50 = por %p48, %p49
    %p51 = scmp.ne.s32.totalorder %s40, %s41
    %p52 = scmp.eq.s32.totalorder %s16, 0
    %p53 = por %p51, %p52
    %p54 = scmp.ne.s32.totalorder %s40, %s41
    %p55 = scmp.eq.s32.totalorder %s17, 3
    %p56 = por %p54, %p55
    %p58 = scmp.ne.s32.totalorder %s41, %s57
    %p59 = scmp.eq.s32.totalorder %s17, 0
    %p60 = por %p58, %p59
    %s62 = sadd.s32 %s61, 1
    %p65 = scmp.eq.s32.totalorder %s11, 3
    %p66 = scmp.ne.s32.totalorder %s61, %s63
    %p67 = scmp.eq.s32.totalorder %s11, 0
    %p68 = por %p66, %p67
    %p69 = scmp.ne.s32.totalorder %s61, %s63
    %p70 = scmp.eq.s32.totalorder %s16, 3
    %p71 = por %p69, %p70
    %p72 = scmp.ne.s32.totalorder %s63, %s64
    %p73 = scmp.eq.s32.totalorder %s16, 0
    %p74 = por %p72, %p73
    %p75 = scmp.ne.s32.totalorder %s63, %s64
    %p76 = scmp.eq.s32.totalorder %s17, 3
    %p77 = por %p75, %p76
    %p79 = scmp.ne.s32.totalorder %s64, %s78
    %p80 = scmp.eq.s32.totalorder %s17, 0
    %p81 = por %p79, %p80
    %s83 = sadd.s32 %s82, 1
    %p86 = scmp.eq.s32.totalorder %s11, 3
    %p87 = scmp.ne.s32.totalorder %s82, %s84
    %p88 = scmp.eq.s32.totalorder %s11, 0
    %p89 = por %p87, %p88
    %p90 = scmp.ne.s32.totalorder %s82, %s84
    %p91 = scmp.eq.s32.totalorder %s16, 3
    %p92 = por %p90, %p91
    %p93 = scmp.ne.s32.totalorder %s84, %s85
    %p94 = scmp.eq.s32.totalorder %s16, 0
    %p95 = por %p93, %p94
    %p96 = scmp.ne.s32.totalorder %s84, %s85
    %p97 = scmp.eq.s32.totalorder %s17, 3
    %p98 = por %p96, %p97
    %p100 = scmp.ne.s32.totalorder %s85, %s99
    %p101 = scmp.eq.s32.totalorder %s17, 0
    %p102 = por %p100, %p101
    %s104 = sadd.s32 %s103, 1
    %p107 = scmp.eq.s32.totalorder %s11, 3
    %p108 = scmp.ne.s32.totalorder %s103, %s105
    %p109 = scmp.eq.s32.totalorder %s11, 0
    %p110 = por %p108, %p109
    %p111 = scmp.ne.s32.totalorder %s103, %s105
    %p112 = scmp.eq.s32.totalorder %s16, 3
    %p113 = por %p111, %p112
    %p114 = scmp.ne.s32.totalorder %s105, %s106
    %p115 = scmp.eq.s32.totalorder %s16, 0
    %p116 = por %p114, %p115
    %p117 = scmp.ne.s32.totalorder %s105, %s106
    %p118 = scmp.eq.s32.totalorder %s17, 3
    %p119 = por %p117, %p118
    %p121 = scmp.ne.s32.totalorder %s106, %s120
    %p122 = scmp.eq.s32.totalorder %s17, 0
    %p123 = por %p121, %p122
    %s125 = sadd.s32 %s124, 1
    %p128 = scmp.eq.s32.totalorder %s11, 3
    %p129 = scmp.ne.s32.totalorder %s124, %s126
    %p130 = scmp.eq.s32.totalorder %s11, 0
    %p131 = por %p129, %p130
    %p132 = scmp.ne.s32.totalorder %s124, %s126
    %p133 = scmp.eq.s32.totalorder %s16, 3
    %p134 = por %p132, %p133
    %p135 = scmp.ne.s32.totalorder %s126, %s127
    %p136 = scmp.eq.s32.totalorder %s16, 0
    %p137 = por %p135, %p136
    %p138 = scmp.ne.s32.totalorder %s126, %s127
    %p139 = scmp.eq.s32.totalorder %s17, 3
    %p140 = por %p138, %p139
    %p142 = scmp.ne.s32.totalorder %s127, %s141
    %p143 = scmp.eq.s32.totalorder %s17, 0
    %p144 = por %p142, %p143
    %s145 = smul.u32 %s18, 2
    %s146 = sadd.s32 %s145, %s19
    %s147 = smul.u32 %s30, 2
    %s148 = sadd.s32 %s147, %s26
    %s149 = ssub.s32 %s146, %s148
    %p150 = scmp.eq.s32.totalorder %s149, 0
    %s152 = sadd.s32 %s151, 1
    %s153 = scalar_select %p150, %s151, %s152
    %p156 = pneg %p150
    %p157 = scmp.eq.s32.totalorder %s11, 3
    %p158 = por %p156, %p157
    %p159 = scmp.ne.s32.totalorder %s151, %s154
    %p160 = scmp.eq.s32.totalorder %s11, 0
    %p161 = por %p159, %p160
    %p162 = scmp.ne.s32.totalorder %s151, %s154
    %p163 = scmp.eq.s32.totalorder %s16, 3
    %p164 = por %p162, %p163
    %p165 = scmp.ne.s32.totalorder %s154, %s155
    %p166 = scmp.eq.s32.totalorder %s16, 0
    %p167 = por %p165, %p166
    %p168 = scmp.ne.s32.totalorder %s154, %s155
    %p169 = scmp.eq.s32.totalorder %s17, 3
    %p170 = por %p168, %p169
    %p172 = scmp.ne.s32.totalorder %s155, %s171
    %p173 = scmp.eq.s32.totalorder %s17, 0
    %p174 = por %p172, %p173
    %p175 = scmp.le.s32.totalorder 1, %s11
    %p176 = scmp.lt.s32.totalorder %s11, 5
    %p177 = pnand %p175, %p176
    %p178 = pneg %p177
    // Predicated region
    $region9: #{tpu_custom_call.1} parent=5 // pred_check
      _
    $region10: #{tpu_custom_call.1} parent=5 // pred_check_branch
      %180 = sbr.rel (%p177) target = $region12
    $region11: #{tpu_custom_call.1} parent=5 // pred_region
      %s181 = ssub.s32 %s11, 1
      // Predicated region
      $region13: #{tpu_custom_call.1} parent=11 // pred_check
        %p182 = pneg %p74
      $region14: #{tpu_custom_call.1} parent=11 // pred_check_branch
        %184 = sbr.rel (%p182) target = $region16
      $region15: #{tpu_custom_call.1} parent=11 // pred_region
        _
      $region16: #{tpu_custom_call.1} parent=11 // pred_fallthru
        _
      // Predicated region
      $region17: #{tpu_custom_call.1} parent=11 // pred_check
        %p185 = pneg %p95
      $region18: #{tpu_custom_call.1} parent=11 // pred_check_branch
        %187 = sbr.rel (%p185) target = $region20
      $region19: #{tpu_custom_call.1} parent=11 // pred_region
        _
      $region20: #{tpu_custom_call.1} parent=11 // pred_fallthru
        _
      // Predicated region
      $region21: #{tpu_custom_call.1} parent=11 // pred_check
        %p188 = pneg %p116
      $region22: #{tpu_custom_call.1} parent=11 // pred_check_branch
        %190 = sbr.rel (%p188) target = $region24
      $region23: #{tpu_custom_call.1} parent=11 // pred_region
        _
      $region24: #{tpu_custom_call.1} parent=11 // pred_fallthru
        _
      // Predicated region
      $region25: #{tpu_custom_call.1} parent=11 // pred_check
        %p191 = pneg %p137
      $region26: #{tpu_custom_call.1} parent=11 // pred_check_branch
        %193 = sbr.rel (%p191) target = $region28
      $region27: #{tpu_custom_call.1} parent=11 // pred_region
        _
      $region28: #{tpu_custom_call.1} parent=11 // pred_fallthru
        _
    $region12: #{tpu_custom_call.1} parent=5 // pred_fallthru
      _
    %p194 = scmp.lt.s32.totalorder %s11, 4
    // Predicated region
    $region29: #{tpu_custom_call.1} parent=5 // pred_check
      %p195 = pneg %p194
    $region30: #{tpu_custom_call.1} parent=5 // pred_check_branch
      %197 = sbr.rel (%p195) target = $region32
    $region31: #{tpu_custom_call.1} parent=5 // pred_region
      // Predicated region
      $region33: #{tpu_custom_call.1} parent=31 // pred_check
        %p198 = pneg %p47
      $region34: #{tpu_custom_call.1} parent=31 // pred_check_branch
        %200 = sbr.rel (%p198) target = $region36
      $region35: #{tpu_custom_call.1} parent=31 // pred_region
        %s201 = smul.u32 %s18, 2
        %s202 = sadd.s32 %s201, %s19
        %p203 = scmp.lt.s32.totalorder %s202, 3
        %s204 = scalar_select %p203, %s202, 3
        %s205 = smul.addr %s204, 20
        %s206 = smul.addr %s205, 8
        %s207 = scalar_lea.vmem %s0, %s206
        %s208 = smul.u32 %s18, 2
        %s209 = sadd.s32 %s208, %s19
      $region36: #{tpu_custom_call.1} parent=31 // pred_fallthru
        _
    $region32: #{tpu_custom_call.1} parent=5 // pred_fallthru
      _
    %p210 = scmp.le.s32.totalorder 1, %s11
    %p211 = scmp.lt.s32.totalorder %s11, 5
    %p212 = pnand %p210, %p211
    %p213 = pneg %p212
    // Predicated region
    $region37: #{tpu_custom_call.1} parent=5 // pred_check
      _
    $region38: #{tpu_custom_call.1} parent=5 // pred_check_branch
      %215 = sbr.rel (%p212) target = $region40
    $region39: #{tpu_custom_call.1} parent=5 // pred_region
      %s216 = ssub.s32 %s11, 1
      %s217 = smul.u32 %s20, 2
      %s218 = sadd.s32 %s217, %s21
      %p219 = scmp.lt.s32.totalorder %s218, 3
      %s220 = scalar_select %p219, %s218, 3
      %s221 = smul.addr %s220, 20
      %s222 = smul.addr %s221, 8
      %s223 = scalar_lea.vmem %s0, %s222
      %p224 = pneg %p53
      %p225 = pneg %p50
      %p226 = pneg %p74
      %p227 = pneg %p71
      %p228 = pneg %p95
      %p229 = pneg %p92
      %p230 = pneg %p116
      %p231 = pneg %p113
      %p232 = pneg %p137
      %p233 = pneg %p134
      %p234 = pneg %p167
      %p235 = pneg %p164
      %s236 = smul.u32 %s20, 2
      %s237 = sadd.s32 %s236, %s21
      %p238 = scmp.lt.s32.totalorder %s237, 3
      %s239 = scalar_select %p238, %s237, 3
      %s240 = smul.addr %s239, 16
      %s241 = smul.addr %s240, 8
      %s242 = scalar_lea.vmem %s5, %s241
      %s243 = smul.u32 %s20, 2
      %s244 = sadd.s32 %s243, %s21
      %p245 = scmp.lt.s32.totalorder %s244, 3
      %s246 = scalar_select %p245, %s244, 3
      %s247 = smul.addr %s246, 20
      %s248 = smul.addr %s247, 8
      %s249 = scalar_lea.vmem %s0, %s248
      %s250 = smul.u32 %s20, 2
      %s251 = sadd.s32 %s250, %s21
      %s252 = smul.u32 %s20, 2
      %s253 = sadd.s32 %s252, %s21
      %p254 = scmp.lt.s32.totalorder %s253, 3
      %s255 = scalar_select %p254, %s253, 3
      %s256 = smul.addr %s255, 16
      %s257 = smul.addr %s256, 8
      %s258 = scalar_lea.vmem %s5, %s257
      %s259 = smul.u32 %s20, 2
      %s260 = sadd.s32 %s259, %s21
      %v262 = vld [vmem:[%s249] sm:$0xff]
      %v263 = vld [vmem:[%s249 + $0x8] sm:$0xff]
      %v264 = vld [vmem:[%s249 + $0x10] sm:$0xff]
      %v265 = vld [vmem:[%s249 + $0x18] sm:$0xff]
      %v266 = vld [vmem:[%s249 + $0x20] sm:$0xff]
      %v267 = vld [vmem:[%s249 + $0x28] sm:$0xff]
      %v268 = vld [vmem:[%s249 + $0x30] sm:$0xff]
      %v269 = vld [vmem:[%s249 + $0x38] sm:$0xff]
      %v270 = vld [vmem:[%s249 + $0x40] sm:$0xff]
      %v271 = vld [vmem:[%s249 + $0x48] sm:$0xff]
      %v272 = vld [vmem:[%s249 + $0x50] sm:$0xff]
      %v273 = vld [vmem:[%s249 + $0x58] sm:$0xff]
      %v274 = vld [vmem:[%s249 + $0x60] sm:$0xff]
      %v275 = vld [vmem:[%s249 + $0x68] sm:$0xff]
      %v276 = vld [vmem:[%s249 + $0x70] sm:$0xff]
      %v277 = vld [vmem:[%s249 + $0x78] sm:$0xff]
      %v278 = vld [vmem:[%s249 + $0x80] sm:$0xff]
      %v279 = vld [vmem:[%s249 + $0x88] sm:$0xff]
      %v280 = vld [vmem:[%s249 + $0x90] sm:$0xff]
      %v281 = vld [vmem:[%s249 + $0x98] sm:$0xff]
      %v282 = vpack.c.bf16 %v263, %v262
      %v283 = vpack.c.bf16 %v265, %v264
      %v284 = vpack.c.bf16 %v267, %v266
      %v285 = vpack.c.bf16 %v269, %v268
      %v286 = vpack.c.bf16 %v271, %v270
      %v287 = vpack.c.bf16 %v273, %v272
      %v288 = vpack.c.bf16 %v275, %v274
      %v289 = vpack.c.bf16 %v277, %v276
      %v290 = vpack.c.bf16 %v279, %v278
      %v291 = vpack.c.bf16 %v281, %v280
      %v292 = vld [vmem:[%s1] sm:$0xf]
      %v293 = vld [vmem:[%s2] sm:$0x1]
      %v295 = vlaneseq
      %v296 = vshrl.u32 %v295, 7
      %v297 = vsub.s32 0, %v296
      %v298 = vrot.slane %v293, %v297
      %vm300 = vcmask 64512
      %v302 = vsel %vm300, %v282, 0
      %v305 = vsel %vm300, %v283, 0
      %v308 = vsel %vm300, %v284, 0
      %v311 = vsel %vm300, %v285, 0
      %v314 = vsel %vm300, %v286, 0
      %v317 = vsel %vm300, %v287, 0
      %v320 = vsel %vm300, %v288, 0
      %v323 = vsel %vm300, %v289, 0
      %v326 = vsel %vm300, %v290, 0
      %v329 = vsel %vm300, %v291, 0
      %vm331 = vcmask 1043456
      %v333 = vsel %vm331, %v292, 0
      %335 = vmatprep.subr.bf16.mxu0 0
      %336 = vmatpush1.bf16.msra.mxu0 %v333
      %337 = vmatprep.subr.bf16.mxu0 0
      %338 = vmatpush1.bf16.msra.mxu0 0
      %339 = vmatprep.subr.bf16.mxu0 0
      %340 = vmatpush1.bf16.msra.mxu0 0
      %341 = vmatprep.subr.bf16.mxu0 0
      %342 = vmatpush1.bf16.msra.mxu0 0
      %343 = vmatprep.subr.bf16.mxu0 0
      %344 = vmatpush1.bf16.msra.mxu0 0
      %345 = vmatprep.subr.bf16.mxu0 0
      %346 = vmatpush1.bf16.msra.mxu0 0
      %347 = vmatprep.subr.bf16.mxu0 0
      %348 = vmatpush1.bf16.msra.mxu0 0
      %349 = vmatprep.subr.bf16.mxu0 0
      %350 = vmatpush1.bf16.msra.mxu0 0
      %351 = vmatprep.subr.bf16.mxu0 0
      %352 = vmatpush1.bf16.msra.mxu0 0
      %353 = vmatprep.subr.bf16.mxu0 0
      %354 = vmatpush1.bf16.msra.mxu0 0
      %355 = vmatprep.subr.bf16.mxu0 0
      %356 = vmatpush1.bf16.msra.mxu0 0
      %357 = vmatprep.subr.bf16.mxu0 0
      %358 = vmatpush1.bf16.msra.mxu0 0
      %359 = vmatprep.subr.bf16.mxu0 0
      %360 = vmatpush1.bf16.msra.mxu0 0
      %361 = vmatprep.subr.bf16.mxu0 0
      %362 = vmatpush1.bf16.msra.mxu0 0
      %363 = vmatprep.subr.bf16.mxu0 0
      %364 = vmatpush1.bf16.msra.mxu0 0
      %365 = vmatprep.subr.bf16.mxu0 0
      %366 = vmatpush1.bf16.msra.mxu0 0
      %367 = vmatprep.mubr.bf16.mxu0 0
      %368 = vmatmul.mubr.bf16.gmra.mrb[0].mxu0 %v302
      %v369 = vpop.f32.mrb[0].mxu0
      %v370 = vadd.f32 %v298, %v369
      %v371 = vpop.f32.mrb[0].mxu0
      %v372 = vpop.f32.mrb[0].mxu0
      %v373 = vadd.f32 %v298, %v372
      %v374 = vpop.f32.mrb[0].mxu0
      %375 = vmatprep.mubr.bf16.mxu0 0
      %376 = vmatmul.mubr.bf16.gmra.mrb[0].mxu0 %v305
      %v377 = vpop.f32.mrb[0].mxu0
      %v378 = vadd.f32 %v298, %v377
      %v379 = vpop.f32.mrb[0].mxu0
      %v380 = vpop.f32.mrb[0].mxu0
      %v381 = vadd.f32 %v298, %v380
      %v382 = vpop.f32.mrb[0].mxu0
      %383 = vmatprep.mubr.bf16.mxu0 0
      %384 = vmatmul.mubr.bf16.gmra.mrb[0].mxu0 %v308
      %v385 = vpop.f32.mrb[0].mxu0
      %v386 = vadd.f32 %v298, %v385
      %v387 = vpop.f32.mrb[0].mxu0
      %v388 = vpop.f32.mrb[0].mxu0
      %v389 = vadd.f32 %v298, %v388
      %v390 = vpop.f32.mrb[0].mxu0
      %391 = vmatprep.mubr.bf16.mxu0 0
      %392 = vmatmul.mubr.bf16.gmra.mrb[0].mxu0 %v311
      %v393 = vpop.f32.mrb[0].mxu0
      %v394 = vadd.f32 %v298, %v393
      %v395 = vpop.f32.mrb[0].mxu0
      %v396 = vpop.f32.mrb[0].mxu0
      %v397 = vadd.f32 %v298, %v396
      %v398 = vpop.f32.mrb[0].mxu0
      %399 = vmatprep.mubr.bf16.mxu0 0
      %400 = vmatmul.mubr.bf16.gmra.mrb[0].mxu0 %v314
      %v401 = vpop.f32.mrb[0].mxu0
      %v402 = vadd.f32 %v298, %v401
      %v403 = vpop.f32.mrb[0].mxu0
      %v404 = vpop.f32.mrb[0].mxu0
      %v405 = vadd.f32 %v298, %v404
      %v406 = vpop.f32.mrb[0].mxu0
      %407 = vmatprep.mubr.bf16.mxu0 0
      %408 = vmatmul.mubr.bf16.gmra.mrb[0].mxu0 %v317
      %v409 = vpop.f32.mrb[0].mxu0
      %v410 = vadd.f32 %v298, %v409
      %v411 = vpop.f32.mrb[0].mxu0
      %v412 = vpop.f32.mrb[0].mxu0
      %v413 = vadd.f32 %v298, %v412
      %v414 = vpop.f32.mrb[0].mxu0
      %415 = vmatprep.mubr.bf16.mxu0 0
      %416 = vmatmul.mubr.bf16.gmra.mrb[0].mxu0 %v320
      %v417 = vpop.f32.mrb[0].mxu0
      %v418 = vadd.f32 %v298, %v417
      %v419 = vpop.f32.mrb[0].mxu0
      %v420 = vpop.f32.mrb[0].mxu0
      %v421 = vadd.f32 %v298, %v420
      %v422 = vpop.f32.mrb[0].mxu0
      %423 = vmatprep.mubr.bf16.mxu0 0
      %424 = vmatmul.mubr.bf16.gmra.mrb[0].mxu0 %v323
      %v425 = vpop.f32.mrb[0].mxu0
      %v426 = vadd.f32 %v298, %v425
      %v427 = vpop.f32.mrb[0].mxu0
      %v428 = vpop.f32.mrb[0].mxu0
      %v429 = vadd.f32 %v298, %v428
      %v430 = vpop.f32.mrb[0].mxu0
      %431 = vmatprep.mubr.bf16.mxu0 0
      %432 = vmatmul.mubr.bf16.gmra.mrb[0].mxu0 %v326
      %v433 = vpop.f32.mrb[0].mxu0
      %v434 = vadd.f32 %v298, %v433
      %v435 = vpop.f32.mrb[0].mxu0
      %v436 = vpop.f32.mrb[0].mxu0
      %v437 = vadd.f32 %v298, %v436
      %v438 = vpop.f32.mrb[0].mxu0
      %439 = vmatprep.mubr.bf16.mxu0 0
      %440 = vmatmul.mubr.bf16.gmra.mrb[0].mxu0 %v329
      %v441 = vpop.f32.mrb[0].mxu0
      %v442 = vadd.f32 %v298, %v441
      %v443 = vpop.f32.mrb[0].mxu0
      %v444 = vpop.f32.mrb[0].mxu0
      %v445 = vadd.f32 %v298, %v444
      %v446 = vpop.f32.mrb[0].mxu0
      %447 = vdwg.mxu0
      %vm448 = vcmp.gt.f32.partialorder %v370, 0.0
      %vm449 = vcmp.gt.f32.partialorder %v373, 0.0
      %vm450 = vcmp.gt.f32.partialorder %v378, 0.0
      %vm451 = vcmp.gt.f32.partialorder %v381, 0.0
      %vm452 = vcmp.gt.f32.partialorder %v386, 0.0
      %vm453 = vcmp.gt.f32.partialorder %v389, 0.0
      %vm454 = vcmp.gt.f32.partialorder %v394, 0.0
      %vm455 = vcmp.gt.f32.partialorder %v397, 0.0
      %vm456 = vcmp.gt.f32.partialorder %v402, 0.0
      %vm457 = vcmp.gt.f32.partialorder %v405, 0.0
      %vm458 = vcmp.gt.f32.partialorder %v410, 0.0
      %vm459 = vcmp.gt.f32.partialorder %v413, 0.0
      %vm460 = vcmp.gt.f32.partialorder %v418, 0.0
      %vm461 = vcmp.gt.f32.partialorder %v421, 0.0
      %vm462 = vcmp.gt.f32.partialorder %v426, 0.0
      %vm463 = vcmp.gt.f32.partialorder %v429, 0.0
      %vm464 = vcmp.gt.f32.partialorder %v434, 0.0
      %vm465 = vcmp.gt.f32.partialorder %v437, 0.0
      %vm466 = vcmp.gt.f32.partialorder %v442, 0.0
      %vm467 = vcmp.gt.f32.partialorder %v445, 0.0
      %v468 = vmul.f32 %v370, 0.1
      %v469 = vmul.f32 %v373, 0.1
      %v470 = vmul.f32 %v378, 0.1
      %v471 = vmul.f32 %v381, 0.1
      %v472 = vmul.f32 %v386, 0.1
      %v473 = vmul.f32 %v389, 0.1
      %v474 = vmul.f32 %v394, 0.1
      %v475 = vmul.f32 %v397, 0.1
      %v476 = vmul.f32 %v402, 0.1
      %v477 = vmul.f32 %v405, 0.1
      %v478 = vmul.f32 %v410, 0.1
      %v479 = vmul.f32 %v413, 0.1
      %v480 = vmul.f32 %v418, 0.1
      %v481 = vmul.f32 %v421, 0.1
      %v482 = vmul.f32 %v426, 0.1
      %v483 = vmul.f32 %v429, 0.1
      %v484 = vmul.f32 %v434, 0.1
      %v485 = vmul.f32 %v437, 0.1
      %v486 = vmul.f32 %v442, 0.1
      %v487 = vmul.f32 %v445, 0.1
      %v488 = vsel %vm448, %v370, %v468
      %v489 = vsel %vm449, %v373, %v469
      %v490 = vsel %vm450, %v378, %v470
      %v491 = vsel %vm451, %v381, %v471
      %v492 = vsel %vm452, %v386, %v472
      %v493 = vsel %vm453, %v389, %v473
      %v494 = vsel %vm454, %v394, %v474
      %v495 = vsel %vm455, %v397, %v475
      %v496 = vsel %vm456, %v402, %v476
      %v497 = vsel %vm457, %v405, %v477
      %v498 = vsel %vm458, %v410, %v478
      %v499 = vsel %vm459, %v413, %v479
      %v500 = vsel %vm460, %v418, %v480
      %v501 = vsel %vm461, %v421, %v481
      %v502 = vsel %vm462, %v426, %v482
      %v503 = vsel %vm463, %v429, %v483
      %v504 = vsel %vm464, %v434, %v484
      %v505 = vsel %vm465, %v437, %v485
      %v506 = vsel %vm466, %v442, %v486
      %v507 = vsel %vm467, %v445, %v487
      %p508 = scmp.eq.s32.totalorder %s21, 0
      %s509 = scalar_select %p508, 1, 0
      %v510 = vstv %s509
      %vm511 = vcmp.eq.s32.totalorder %v510, 1
      %p512 = scmp.eq.s32.totalorder %s21, 1
      %s513 = scalar_select %p512, 1, 0
      %v514 = vstv %s513
      %vm515 = vcmp.eq.s32.totalorder %v514, 1
      %v516 = vsel %vm511, 1, 0
      %v517 = vsel %vm515, 1, 0
      %vm518 = vcmp.eq.s32.totalorder %v516, 1
      %vm519 = vcmp.eq.s32.totalorder %v517, 1
      %v520 = vsel %vm518, 0.0, %v488
      %v521 = vsel %vm518, 0.0, %v489
      %v522 = vsel 0, 0.0, %v490
      %v523 = vsel 0, 0.0, %v491
      %v524 = vsel 0, 0.0, %v492
      %v525 = vsel 0, 0.0, %v493
      %v526 = vsel 0, 0.0, %v494
      %v527 = vsel 0, 0.0, %v495
      %v528 = vsel 0, 0.0, %v496
      %v529 = vsel 0, 0.0, %v497
      %v530 = vsel 0, 0.0, %v498
      %v531 = vsel 0, 0.0, %v499
      %v532 = vsel 0, 0.0, %v500
      %v533 = vsel 0, 0.0, %v501
      %v534 = vsel 0, 0.0, %v502
      %v535 = vsel 0, 0.0, %v503
      %v536 = vsel 0, 0.0, %v504
      %v537 = vsel 0, 0.0, %v505
      %v538 = vsel %vm519, 0.0, %v506
      %v539 = vsel %vm519, 0.0, %v507
      %v540 = vpack.c.bf16 %v521, %v520
      %v541 = vpack.c.bf16 %v523, %v522
      %v542 = vpack.c.bf16 %v525, %v524
      %v543 = vpack.c.bf16 %v527, %v526
      %v544 = vpack.c.bf16 %v529, %v528
      %v545 = vpack.c.bf16 %v531, %v530
      %v546 = vpack.c.bf16 %v533, %v532
      %v547 = vpack.c.bf16 %v535, %v534
      %v548 = vpack.c.bf16 %v537, %v536
      %v549 = vpack.c.bf16 %v539, %v538
      %v551 = vshrl.u32 %v540, 16
      %v553 = vrot.slane %v551, 7
      %v554 = vshll.u32 %v540, 16
      %v556 = vor.u32 %v553, %v554
      %v558 = vshrl.u32 %v541, 16
      %v560 = vrot.slane %v558, 7
      %v561 = vshll.u32 %v541, 16
      %v563 = vor.u32 %v560, %v561
      %v565 = vshrl.u32 %v542, 16
      %v567 = vrot.slane %v565, 7
      %v568 = vshll.u32 %v542, 16
      %v570 = vor.u32 %v567, %v568
      %v572 = vshrl.u32 %v543, 16
      %v574 = vrot.slane %v572, 7
      %v575 = vshll.u32 %v543, 16
      %v577 = vor.u32 %v574, %v575
      %v579 = vshrl.u32 %v544, 16
      %v581 = vrot.slane %v579, 7
      %v582 = vshll.u32 %v544, 16
      %v584 = vor.u32 %v581, %v582
      %v586 = vshrl.u32 %v545, 16
      %v588 = vrot.slane %v586, 7
      %v589 = vshll.u32 %v545, 16
      %v591 = vor.u32 %v588, %v589
      %v593 = vshrl.u32 %v546, 16
      %v595 = vrot.slane %v593, 7
      %v596 = vshll.u32 %v546, 16
      %v598 = vor.u32 %v595, %v596
      %v600 = vshrl.u32 %v547, 16
      %v602 = vrot.slane %v600, 7
      %v603 = vshll.u32 %v547, 16
      %v605 = vor.u32 %v602, %v603
      %v607 = vshrl.u32 %v548, 16
      %v609 = vrot.slane %v607, 7
      %v610 = vshll.u32 %v548, 16
      %v612 = vor.u32 %v609, %v610
      %v614 = vshrl.u32 %v549, 16
      %v616 = vrot.slane %v614, 7
      %v617 = vshll.u32 %v549, 16
      %v619 = vor.u32 %v616, %v617
      %vm630 = vcmask 1040384
      %vm631 = vsmask.f32 256
      %vm632 = vmand %vm630, %vm631
      %v633 = vsel %vm632, 0, %v556
      %v634 = vsel %vm632, 0, %v563
      %v635 = vsel %vm632, 0, %v570
      %v636 = vsel %vm632, 0, %v577
      %v637 = vsel %vm632, 0, %v584
      %v638 = vsel %vm632, 0, %v591
      %v639 = vsel %vm632, 0, %v598
      %v640 = vsel %vm632, 0, %v605
      %v641 = vsel %vm632, 0, %v612
      %v642 = vsel %vm632, 0, %v619
      %v643 = vrot.slane %v554, 1
      %v644 = vor.u32 %v551, %v643
      %v645 = vrot.slane %v561, 1
      %v646 = vor.u32 %v558, %v645
      %v647 = vrot.slane %v568, 1
      %v648 = vor.u32 %v565, %v647
      %v649 = vrot.slane %v575, 1
      %v650 = vor.u32 %v572, %v649
      %v651 = vrot.slane %v582, 1
      %v652 = vor.u32 %v579, %v651
      %v653 = vrot.slane %v589, 1
      %v654 = vor.u32 %v586, %v653
      %v655 = vrot.slane %v596, 1
      %v656 = vor.u32 %v593, %v655
      %v657 = vrot.slane %v603, 1
      %v658 = vor.u32 %v600, %v657
      %v659 = vrot.slane %v610, 1
      %v660 = vor.u32 %v607, %v659
      %v661 = vrot.slane %v617, 1
      %v662 = vor.u32 %v614, %v661
      %vm673 = vcmask 1047552
      %vm674 = vsmask.f32 7424
      %vm675 = vmand %vm673, %vm674
      %v676 = vsel %vm675, %v644, 0
      %v677 = vsel %vm675, %v646, 0
      %v678 = vsel %vm675, %v648, 0
      %v679 = vsel %vm675, %v650, 0
      %v680 = vsel %vm675, %v652, 0
      %v681 = vsel %vm675, %v654, 0
      %v682 = vsel %vm675, %v656, 0
      %v683 = vsel %vm675, %v658, 0
      %v684 = vsel %vm675, %v660, 0
      %v685 = vsel %vm675, %v662, 0
      %696 = vrot.lane.b32.xlu0 %v540, 4
      %v697 = vpop.permute.xlu0 %696
      %698 = vrot.lane.b32.xlu0 %v541, 4
      %v699 = vpop.permute.xlu0 %698
      %700 = vrot.lane.b32.xlu0 %v542, 4
      %v701 = vpop.permute.xlu0 %700
      %702 = vrot.lane.b32.xlu0 %v543, 4
      %v703 = vpop.permute.xlu0 %702
      %704 = vrot.lane.b32.xlu0 %v544, 4
      %v705 = vpop.permute.xlu0 %704
      %706 = vrot.lane.b32.xlu0 %v545, 4
      %v707 = vpop.permute.xlu0 %706
      %708 = vrot.lane.b32.xlu0 %v546, 4
      %v709 = vpop.permute.xlu0 %708
      %710 = vrot.lane.b32.xlu0 %v547, 4
      %v711 = vpop.permute.xlu0 %710
      %712 = vrot.lane.b32.xlu0 %v548, 4
      %v713 = vpop.permute.xlu0 %712
      %714 = vrot.lane.b32.xlu0 %v549, 4
      %v715 = vpop.permute.xlu0 %714
      %726 = vrot.lane.b32.xlu0 %v676, 8
      %v727 = vpop.permute.xlu0 %726
      %728 = vrot.lane.b32.xlu0 %v677, 8
      %v729 = vpop.permute.xlu0 %728
      %730 = vrot.lane.b32.xlu0 %v678, 8
      %v731 = vpop.permute.xlu0 %730
      %732 = vrot.lane.b32.xlu0 %v679, 8
      %v733 = vpop.permute.xlu0 %732
      %734 = vrot.lane.b32.xlu0 %v680, 8
      %v735 = vpop.permute.xlu0 %734
      %736 = vrot.lane.b32.xlu0 %v681, 8
      %v737 = vpop.permute.xlu0 %736
      %738 = vrot.lane.b32.xlu0 %v682, 8
      %v739 = vpop.permute.xlu0 %738
      %740 = vrot.lane.b32.xlu0 %v683, 8
      %v741 = vpop.permute.xlu0 %740
      %742 = vrot.lane.b32.xlu0 %v684, 8
      %v743 = vpop.permute.xlu0 %742
      %744 = vrot.lane.b32.xlu0 %v685, 8
      %v745 = vpop.permute.xlu0 %744
      %vm746 = vcmask 31744
      %v749 = vsel %vm746, %v633, %v697
      %v752 = vsel %vm746, %v634, %v699
      %v755 = vsel %vm746, %v635, %v701
      %v758 = vsel %vm746, %v636, %v703
      %v761 = vsel %vm746, %v637, %v705
      %v764 = vsel %vm746, %v638, %v707
      %v767 = vsel %vm746, %v639, %v709
      %v770 = vsel %vm746, %v640, %v711
      %v773 = vsel %vm746, %v641, %v713
      %v776 = vsel %vm746, %v642, %v715
      %v778 = vsel %vm300, %v749, %v727
      %v780 = vsel %vm300, %v752, %v729
      %v782 = vsel %vm300, %v755, %v731
      %v784 = vsel %vm300, %v758, %v733
      %v786 = vsel %vm300, %v761, %v735
      %v788 = vsel %vm300, %v764, %v737
      %v790 = vsel %vm300, %v767, %v739
      %v792 = vsel %vm300, %v770, %v741
      %v794 = vsel %vm300, %v773, %v743
      %v796 = vsel %vm300, %v776, %v745
      %805 = vrot.lane.b32.xlu0 %v780, 12
      %v806 = vpop.permute.xlu0 %805
      %807 = vrot.lane.b32.xlu0 %v782, 12
      %v808 = vpop.permute.xlu0 %807
      %809 = vrot.lane.b32.xlu0 %v784, 12
      %v810 = vpop.permute.xlu0 %809
      %811 = vrot.lane.b32.xlu0 %v786, 12
      %v812 = vpop.permute.xlu0 %811
      %813 = vrot.lane.b32.xlu0 %v788, 12
      %v814 = vpop.permute.xlu0 %813
      %815 = vrot.lane.b32.xlu0 %v790, 12
      %v816 = vpop.permute.xlu0 %815
      %817 = vrot.lane.b32.xlu0 %v792, 12
      %v818 = vpop.permute.xlu0 %817
      %819 = vrot.lane.b32.xlu0 %v794, 12
      %v820 = vpop.permute.xlu0 %819
      %822 = vrot.lane.b32.xlu0 %v782, 24
      %v823 = vpop.permute.xlu0 %822
      %824 = vrot.lane.b32.xlu0 %v784, 24
      %v825 = vpop.permute.xlu0 %824
      %826 = vrot.lane.b32.xlu0 %v786, 24
      %v827 = vpop.permute.xlu0 %826
      %828 = vrot.lane.b32.xlu0 %v788, 24
      %v829 = vpop.permute.xlu0 %828
      %830 = vrot.lane.b32.xlu0 %v790, 24
      %v831 = vpop.permute.xlu0 %830
      %832 = vrot.lane.b32.xlu0 %v792, 24
      %v833 = vpop.permute.xlu0 %832
      %834 = vrot.lane.b32.xlu0 %v794, 24
      %v835 = vpop.permute.xlu0 %834
      %836 = vrot.lane.b32.xlu0 %v796, 24
      %v837 = vpop.permute.xlu0 %836
      %vm838 = vcmask 97280
      %v840 = vsel %vm838, %v778, %v806
      %v842 = vsel %vm838, %v780, %v808
      %v844 = vsel %vm838, %v782, %v810
      %v846 = vsel %vm838, %v784, %v812
      %v848 = vsel %vm838, %v786, %v814
      %v850 = vsel %vm838, %v788, %v816
      %v852 = vsel %vm838, %v790, %v818
      %v854 = vsel %vm838, %v792, %v820
      %vm855 = vcmask 195584
      %v857 = vsel %vm855, %v840, %v823
      %v859 = vsel %vm855, %v842, %v825
      %v861 = vsel %vm855, %v844, %v827
      %v863 = vsel %vm855, %v846, %v829
      %v865 = vsel %vm855, %v848, %v831
      %v867 = vsel %vm855, %v850, %v833
      %v869 = vsel %vm855, %v852, %v835
      %v871 = vsel %vm855, %v854, %v837
      %v872 = vld [vmem:[%s3] sm:$0xf]
      %v873 = vld [vmem:[%s3 + $0x4] sm:$0xf]
      %v874 = vld [vmem:[%s3 + $0x8] sm:$0xf]
      %v875 = vld [vmem:[%s3 + $0xc] sm:$0xf]
      %v876 = vld [vmem:[%s3 + $0x10] sm:$0x3]
      %v877 = vld [vmem:[%s4] sm:$0x1]
      %v879 = vlaneseq
      %v880 = vshrl.u32 %v879, 7
      %v881 = vsub.s32 0, %v880
      %v882 = vrot.slane %v877, %v881
      %v889 = vunpack.c.l.b16 %v872
      %v890 = vunpack.c.l.b16 %v873
      %v891 = vunpack.c.l.b16 %v874
      %v892 = vunpack.c.l.b16 %v875
      %v893 = vunpack.c.l.b16 %v876
      %v894 = vpack.c.b16 %v890, %v889
      %v895 = vpack.c.b16 %v892, %v891
      %v896 = vpack.c.b16 %v893, %v893
      %vm899 = vcmask 293888
      %v900 = vsel %vm899, %v857, 0
      %v902 = vsel %vm899, %v859, 0
      %v904 = vsel %vm899, %v861, 0
      %v906 = vsel %vm899, %v863, 0
      %v908 = vsel %vm899, %v865, 0
      %v910 = vsel %vm899, %v867, 0
      %v912 = vsel %vm899, %v869, 0
      %v914 = vsel %vm899, %v871, 0
      %vm916 = vcmask 1041408
      %v918 = vsel %vm916, %v896, 0
      %920 = vmatprep.subr.bf16.mxu0 0
      %921 = vmatpush1.bf16.msra.mxu0 %v894
      %922 = vmatprep.subr.bf16.mxu0 0
      %923 = vmatpush1.bf16.msra.mxu0 %v895
      %924 = vmatprep.subr.bf16.mxu0 0
      %925 = vmatpush1.bf16.msra.mxu0 %v918
      %926 = vmatprep.subr.bf16.mxu0 0
      %927 = vmatpush1.bf16.msra.mxu0 0
      %928 = vmatprep.subr.bf16.mxu0 0
      %929 = vmatpush1.bf16.msra.mxu0 0
      %930 = vmatprep.subr.bf16.mxu0 0
      %931 = vmatpush1.bf16.msra.mxu0 0
      %932 = vmatprep.subr.bf16.mxu0 0
      %933 = vmatpush1.bf16.msra.mxu0 0
      %934 = vmatprep.subr.bf16.mxu0 0
      %935 = vmatpush1.bf16.msra.mxu0 0
      %936 = vmatprep.subr.bf16.mxu0 0
      %937 = vmatpush1.bf16.msra.mxu0 0
      %938 = vmatprep.subr.bf16.mxu0 0
      %939 = vmatpush1.bf16.msra.mxu0 0
      %940 = vmatprep.subr.bf16.mxu0 0
      %941 = vmatpush1.bf16.msra.mxu0 0
      %942 = vmatprep.subr.bf16.mxu0 0
      %943 = vmatpush1.bf16.msra.mxu0 0
      %944 = vmatprep.subr.bf16.mxu0 0
      %945 = vmatpush1.bf16.msra.mxu0 0
      %946 = vmatprep.subr.bf16.mxu0 0
      %947 = vmatpush1.bf16.msra.mxu0 0
      %948 = vmatprep.subr.bf16.mxu0 0
      %949 = vmatpush1.bf16.msra.mxu0 0
      %950 = vmatprep.subr.bf16.mxu0 0
      %951 = vmatpush1.bf16.msra.mxu0 0
      %952 = vmatprep.mubr.bf16.mxu0 0
      %953 = vmatmul.mubr.bf16.gmra.mrb[0].mxu0 %v900
      %v954 = vpop.f32.mrb[0].mxu0
      %v955 = vadd.f32 %v882, %v954
      %v956 = vpop.f32.mrb[0].mxu0
      %v957 = vpop.f32.mrb[0].mxu0
      %v958 = vadd.f32 %v882, %v957
      %v959 = vpop.f32.mrb[0].mxu0
      %960 = vmatprep.mubr.bf16.mxu0 0
      %961 = vmatmul.mubr.bf16.gmra.mrb[0].mxu0 %v902
      %v962 = vpop.f32.mrb[0].mxu0
      %v963 = vadd.f32 %v882, %v962
      %v964 = vpop.f32.mrb[0].mxu0
      %v965 = vpop.f32.mrb[0].mxu0
      %v966 = vadd.f32 %v882, %v965
      %v967 = vpop.f32.mrb[0].mxu0
      %968 = vmatprep.mubr.bf16.mxu0 0
      %969 = vmatmul.mubr.bf16.gmra.mrb[0].mxu0 %v904
      %v970 = vpop.f32.mrb[0].mxu0
      %v971 = vadd.f32 %v882, %v970
      %v972 = vpop.f32.mrb[0].mxu0
      %v973 = vpop.f32.mrb[0].mxu0
      %v974 = vadd.f32 %v882, %v973
      %v975 = vpop.f32.mrb[0].mxu0
      %976 = vmatprep.mubr.bf16.mxu0 0
      %977 = vmatmul.mubr.bf16.gmra.mrb[0].mxu0 %v906
      %v978 = vpop.f32.mrb[0].mxu0
      %v979 = vadd.f32 %v882, %v978
      %v980 = vpop.f32.mrb[0].mxu0
      %v981 = vpop.f32.mrb[0].mxu0
      %v982 = vadd.f32 %v882, %v981
      %v983 = vpop.f32.mrb[0].mxu0
      %984 = vmatprep.mubr.bf16.mxu0 0
      %985 = vmatmul.mubr.bf16.gmra.mrb[0].mxu0 %v908
      %v986 = vpop.f32.mrb[0].mxu0
      %v987 = vadd.f32 %v882, %v986
      %v988 = vpop.f32.mrb[0].mxu0
      %v989 = vpop.f32.mrb[0].mxu0
      %v990 = vadd.f32 %v882, %v989
      %v991 = vpop.f32.mrb[0].mxu0
      %992 = vmatprep.mubr.bf16.mxu0 0
      %993 = vmatmul.mubr.bf16.gmra.mrb[0].mxu0 %v910
      %v994 = vpop.f32.mrb[0].mxu0
      %v995 = vadd.f32 %v882, %v994
      %v996 = vpop.f32.mrb[0].mxu0
      %v997 = vpop.f32.mrb[0].mxu0
      %v998 = vadd.f32 %v882, %v997
      %v999 = vpop.f32.mrb[0].mxu0
      %1000 = vmatprep.mubr.bf16.mxu0 0
      %1001 = vmatmul.mubr.bf16.gmra.mrb[0].mxu0 %v912
      %v1002 = vpop.f32.mrb[0].mxu0
      %v1003 = vadd.f32 %v882, %v1002
      %v1004 = vpop.f32.mrb[0].mxu0
      %v1005 = vpop.f32.mrb[0].mxu0
      %v1006 = vadd.f32 %v882, %v1005
      %v1007 = vpop.f32.mrb[0].mxu0
      %1008 = vmatprep.mubr.bf16.mxu0 0
      %1009 = vmatmul.mubr.bf16.gmra.mrb[0].mxu0 %v914
      %v1010 = vpop.f32.mrb[0].mxu0
      %v1011 = vadd.f32 %v882, %v1010
      %v1012 = vpop.f32.mrb[0].mxu0
      %v1013 = vpop.f32.mrb[0].mxu0
      %v1014 = vadd.f32 %v882, %v1013
      %v1015 = vpop.f32.mrb[0].mxu0
      %1016 = vdwg.mxu0
      %vm1017 = vcmp.gt.f32.partialorder %v955, 0.0
      %vm1018 = vcmp.gt.f32.partialorder %v958, 0.0
      %vm1019 = vcmp.gt.f32.partialorder %v963, 0.0
      %vm1020 = vcmp.gt.f32.partialorder %v966, 0.0
      %vm1021 = vcmp.gt.f32.partialorder %v971, 0.0
      %vm1022 = vcmp.gt.f32.partialorder %v974, 0.0
      %vm1023 = vcmp.gt.f32.partialorder %v979, 0.0
      %vm1024 = vcmp.gt.f32.partialorder %v982, 0.0
      %vm1025 = vcmp.gt.f32.partialorder %v987, 0.0
      %vm1026 = vcmp.gt.f32.partialorder %v990, 0.0
      %vm1027 = vcmp.gt.f32.partialorder %v995, 0.0
      %vm1028 = vcmp.gt.f32.partialorder %v998, 0.0
      %vm1029 = vcmp.gt.f32.partialorder %v1003, 0.0
      %vm1030 = vcmp.gt.f32.partialorder %v1006, 0.0
      %vm1031 = vcmp.gt.f32.partialorder %v1011, 0.0
      %vm1032 = vcmp.gt.f32.partialorder %v1014, 0.0
      %v1033 = vmul.f32 %v955, 0.1
      %v1034 = vmul.f32 %v958, 0.1
      %v1035 = vmul.f32 %v963, 0.1
      %v1036 = vmul.f32 %v966, 0.1
      %v1037 = vmul.f32 %v971, 0.1
      %v1038 = vmul.f32 %v974, 0.1
      %v1039 = vmul.f32 %v979, 0.1
      %v1040 = vmul.f32 %v982, 0.1
      %v1041 = vmul.f32 %v987, 0.1
      %v1042 = vmul.f32 %v990, 0.1
      %v1043 = vmul.f32 %v995, 0.1
      %v1044 = vmul.f32 %v998, 0.1
      %v1045 = vmul.f32 %v1003, 0.1
      %v1046 = vmul.f32 %v1006, 0.1
      %v1047 = vmul.f32 %v1011, 0.1
      %v1048 = vmul.f32 %v1014, 0.1
      %v1049 = vsel %vm1017, %v955, %v1033
      %v1050 = vsel %vm1018, %v958, %v1034
      %v1051 = vsel %vm1019, %v963, %v1035
      %v1052 = vsel %vm1020, %v966, %v1036
      %v1053 = vsel %vm1021, %v971, %v1037
      %v1054 = vsel %vm1022, %v974, %v1038
      %v1055 = vsel %vm1023, %v979, %v1039
      %v1056 = vsel %vm1024, %v982, %v1040
      %v1057 = vsel %vm1025, %v987, %v1041
      %v1058 = vsel %vm1026, %v990, %v1042
      %v1059 = vsel %vm1027, %v995, %v1043
      %v1060 = vsel %vm1028, %v998, %v1044
      %v1061 = vsel %vm1029, %v1003, %v1045
      %v1062 = vsel %vm1030, %v1006, %v1046
      %v1063 = vsel %vm1031, %v1011, %v1047
      %v1064 = vsel %vm1032, %v1014, %v1048
      %v1065 = vadd.f32 %v1049, %v264
      %v1066 = vadd.f32 %v1050, %v265
      %v1067 = vadd.f32 %v1051, %v266
      %v1068 = vadd.f32 %v1052, %v267
      %v1069 = vadd.f32 %v1053, %v268
      %v1070 = vadd.f32 %v1054, %v269
      %v1071 = vadd.f32 %v1055, %v270
      %v1072 = vadd.f32 %v1056, %v271
      %v1073 = vadd.f32 %v1057, %v272
      %v1074 = vadd.f32 %v1058, %v273
      %v1075 = vadd.f32 %v1059, %v274
      %v1076 = vadd.f32 %v1060, %v275
      %v1077 = vadd.f32 %v1061, %v276
      %v1078 = vadd.f32 %v1062, %v277
      %v1079 = vadd.f32 %v1063, %v278
      %v1080 = vadd.f32 %v1064, %v279
      %1081 = vst.msk [vmem:[%s258] sm:$0xff] %vm300, %v1065
      %1082 = vst.msk [vmem:[%s258 + $0x8] sm:$0xff] %vm300, %v1066
      %1083 = vst.msk [vmem:[%s258 + $0x10] sm:$0xff] %vm300, %v1067
      %1084 = vst.msk [vmem:[%s258 + $0x18] sm:$0xff] %vm300, %v1068
      %1085 = vst.msk [vmem:[%s258 + $0x20] sm:$0xff] %vm300, %v1069
      %1086 = vst.msk [vmem:[%s258 + $0x28] sm:$0xff] %vm300, %v1070
      %1087 = vst.msk [vmem:[%s258 + $0x30] sm:$0xff] %vm300, %v1071
      %1088 = vst.msk [vmem:[%s258 + $0x38] sm:$0xff] %vm300, %v1072
      %1089 = vst.msk [vmem:[%s258 + $0x40] sm:$0xff] %vm300, %v1073
      %1090 = vst.msk [vmem:[%s258 + $0x48] sm:$0xff] %vm300, %v1074
      %1091 = vst.msk [vmem:[%s258 + $0x50] sm:$0xff] %vm300, %v1075
      %1092 = vst.msk [vmem:[%s258 + $0x58] sm:$0xff] %vm300, %v1076
      %1093 = vst.msk [vmem:[%s258 + $0x60] sm:$0xff] %vm300, %v1077
      %1094 = vst.msk [vmem:[%s258 + $0x68] sm:$0xff] %vm300, %v1078
      %1095 = vst.msk [vmem:[%s258 + $0x70] sm:$0xff] %vm300, %v1079
      %1096 = vst.msk [vmem:[%s258 + $0x78] sm:$0xff] %vm300, %v1080
      %s1097 = smul.u32 %s20, 2
      %s1098 = sadd.s32 %s1097, %s21
      %p1099 = scmp.lt.s32.totalorder %s1098, 3
      %s1100 = scalar_select %p1099, %s1098, 3
      %s1101 = smul.addr %s1100, 16
      %s1102 = smul.addr %s1101, 8
      %s1103 = scalar_lea.vmem %s5, %s1102
      // Predicated region
      $region41: #{tpu_custom_call.1} parent=39 // pred_check
        %p1104 = pneg %p164
      $region42: #{tpu_custom_call.1} parent=39 // pred_check_branch
        %1106 = sbr.rel (%p1104) target = $region44
      $region43: #{tpu_custom_call.1} parent=39 // pred_region
        %s1107 = smul.u32 %s20, 2
        %s1108 = sadd.s32 %s1107, %s21
      $region44: #{tpu_custom_call.1} parent=39 // pred_fallthru
        _
    $region40: #{tpu_custom_call.1} parent=5 // pred_fallthru
      _
    %p1109 = scmp.le.s32.totalorder 2, %s11
    // Predicated region
    $region45: #{tpu_custom_call.1} parent=5 // pred_check
      %p1110 = pneg %p1109
    $region46: #{tpu_custom_call.1} parent=5 // pred_check_branch
      %1112 = sbr.rel (%p1110) target = $region48
    $region47: #{tpu_custom_call.1} parent=5 // pred_region
      %s1113 = ssub.s32 %s11, 2
      // Predicated region
      $region49: #{tpu_custom_call.1} parent=47 // pred_check
        %p1114 = pneg %p170
      $region50: #{tpu_custom_call.1} parent=47 // pred_check_branch
        %1116 = sbr.rel (%p1114) target = $region52
      $region51: #{tpu_custom_call.1} parent=47 // pred_region
        %s1117 = smul.u32 %s22, 2
        %s1118 = sadd.s32 %s1117, %s23
        %p1119 = scmp.lt.s32.totalorder %s1118, 3
        %s1120 = scalar_select %p1119, %s1118, 3
        %s1121 = smul.addr %s1120, 16
        %s1122 = smul.addr %s1121, 8
        %s1123 = scalar_lea.vmem %s5, %s1122
      $region52: #{tpu_custom_call.1} parent=47 // pred_fallthru
        _
    $region48: #{tpu_custom_call.1} parent=5 // pred_fallthru
      _
  $region6: #{tpu_custom_call.1} parent=0 // loop_footer
    %s15 = sadd.s32 1, %s11
  $region7: #{tpu_custom_call.1} parent=0 // loop_footer_branch
    %10 = sbr.rel target = $region3
  $region8: #{tpu_custom_call.1} parent=0 // loop_exit
    _

</llo_original>
